<compile_context>
chip_gen: v7x
topology: tpu7x:2x2x1
jax: 0.10.0
libtpu: 0.0.40
codegen_flags: <defaults>
</compile_context>

<pallas_src>
import functools
import math

import jax
import jax.numpy as jnp
from jax import lax
from jax.experimental import pallas as pl
from jax.experimental.pallas import tpu as pltpu


def _label_smoothing_kernel(x_ref, tgt_ref, loss_ref,
                            m_ref, s_ref, sx_ref, xt_ref, xi_ref, *,
                            confidence, smoothing_value, log_conf, log_smooth,
                            ignore_index, ign_chunk, ign_off, vocab, block_v,
                            mask_v):
    # x_ref   : (block_b, block_v) logits tile, native dtype (e.g. bf16)
    # tgt_ref : (block_b, 1) int32 targets
    # loss_ref: (block_b, 1) f32 per-row loss (written on the last vocab chunk)
    # m/s/sx/xt/xi_ref: (block_b, 1) f32 VMEM scratch carried across vocab chunks
    j = pl.program_id(1)
    nv = pl.num_programs(1)

    @pl.when(j == 0)
    def _():
        m_ref[...] = jnp.full(m_ref.shape, -jnp.inf, dtype=jnp.float32)
        s_ref[...] = jnp.zeros(s_ref.shape, dtype=jnp.float32)
        sx_ref[...] = jnp.zeros(sx_ref.shape, dtype=jnp.float32)
        xt_ref[...] = jnp.zeros(xt_ref.shape, dtype=jnp.float32)
        xi_ref[...] = jnp.zeros(xi_ref.shape, dtype=jnp.float32)

    x = x_ref[...]                                  # native dtype; casts fuse below
    bB, bV = x.shape
    tgt = tgt_ref[...]                              # (bB, 1) int32

    lane = lax.broadcasted_iota(jnp.int32, (bB, bV), 1)
    col = j * block_v + lane                        # global vocab column ids

    xf = x.astype(jnp.float32)
    if mask_v:
        # Last vocab chunk may extend past V: padded lanes -> -inf so they
        # vanish from max/exp, and are explicitly zeroed in the plain sum.
        lane_ok = col < vocab
        xf = jnp.where(lane_ok, xf, -jnp.inf)

    # ---- online logsumexp across vocab chunks (all math in f32) ----
    m_prev = m_ref[...]
    m_new = jnp.maximum(m_prev, jnp.max(xf, axis=-1, keepdims=True))
    e = jnp.exp(xf - m_new)                         # exp(-inf - m) == 0 on padded lanes
    s_ref[...] = s_ref[...] * jnp.exp(m_prev - m_new) + jnp.sum(
        e, axis=-1, keepdims=True)
    m_ref[...] = m_new

    # ---- fused plain sum and target-column pick (no materialized log-probs) ----
    if mask_v:
        sx_ref[...] += jnp.sum(jnp.where(lane_ok, xf, 0.0), axis=-1, keepdims=True)
    else:
        sx_ref[...] += jnp.sum(xf, axis=-1, keepdims=True)
    xt_ref[...] += jnp.sum(jnp.where(col == tgt, xf, 0.0), axis=-1, keepdims=True)

    # ignore_index column: compile-time chunk + static column offset -> a
    # near-free single-lane slice instead of a full-tile compare/select/reduce.
    @pl.when(j == ign_chunk)
    def _():
        xi_ref[...] = x[:, ign_off:ign_off + 1].astype(jnp.float32)

    # ---- finalize: closed-form smoothed-KL per row ----
    @pl.when(j == nv - 1)
    def _():
        lse = m_ref[...] + jnp.log(s_ref[...])
        logp_tgt = xt_ref[...] - lse
        logp_ign = xi_ref[...] - lse
        row_sum_logp = sx_ref[...] - jnp.float32(vocab) * lse
        smooth_sum = row_sum_logp - logp_tgt - logp_ign
        loss_row = smoothing_value * ((vocab - 2) * log_smooth - smooth_sum)
        if confidence > 0.0:   # label_smoothing == 1.0 -> term is exactly 0
            loss_row = loss_row + confidence * (log_conf - logp_tgt)
        # rows whose target is the ignore index contribute 0 (but still count
        # in the 'batchmean' denominator, handled in the wrapper)
        loss_ref[...] = jnp.where(tgt != ignore_index, loss_row, 0.0)


def _default_tile_bytes():
    # Budget the *in-kernel* working set (2x double-buffered native input tile
    # + a few streamed f32/i32 temps), not just the raw input tile, so the
    # 2-deep pipeline stays inside the default 32 MiB scoped VMEM everywhere.
    # v7x only has 64 MiB physical VMEM -> use a tighter tile there.
    try:
        vmem = pltpu.get_tpu_info().vmem_capacity_bytes
    except Exception:
        vmem = 64 << 20
    return (3 << 20) if vmem >= (96 << 20) else (2 << 20)


def _choose_blocks(batch, vocab, itemsize, target_tile_bytes):
    row_bytes = vocab * itemsize
    if batch * row_bytes <= target_tile_bytes:
        return batch, vocab                            # whole problem in one tile
    if 8 * row_bytes <= target_tile_bytes:
        rows = target_tile_bytes // row_bytes          # full-V rows, tile the batch
        block_b = min(batch, max(8, (rows // 8) * 8))
        return block_b, vocab
    # Large vocab: tile both axes (lane-dense multiple-of-128 vocab chunks).
    block_b = 8 if batch >= 8 else batch
    cols = target_tile_bytes // max(block_b * itemsize, 1)
    block_v = max(128, (cols // 128) * 128)
    block_v = min(block_v, ((vocab + 127) // 128) * 128)
    return block_b, block_v


def label_smoothing_loss(output, target, *, label_smoothing, tgt_vocab_size,
                         ignore_index=-100, block_b=None, block_v=None,
                         target_tile_bytes=None, vmem_limit_bytes=None):
    """JAX/Pallas equivalent of LabelSmoothingLoss.forward.

    output: (B, V) logits, any float dtype (bf16 recommended — no wrapper cast)
    target: (B,)   int labels
    returns scalar float32 loss (KL-div, 'batchmean' reduction)
    """
    assert 0.0 < label_smoothing <= 1.0
    B, V = output.shape
    assert V == tgt_vocab_size
    # PyTorch indexes the one_hot buffer with ignore_index, so negative values
    # (e.g. the default -100) address column V + ignore_index.
    ign_col = ignore_index if ignore_index >= 0 else ignore_index + V
    assert 0 <= ign_col < V, "ignore_index must address a column of the vocab"

    smoothing_value = label_smoothing / (tgt_vocab_size - 2)
    confidence = 1.0 - label_smoothing

    if target_tile_bytes is None:
        target_tile_bytes = _default_tile_bytes()
    auto_b, auto_v = _choose_blocks(B, V, output.dtype.itemsize, target_tile_bytes)
    block_b = auto_b if block_b is None else min(int(block_b), B)
    block_v = auto_v if block_v is None else int(block_v)
    if block_b != B:
        block_b = max(8, (block_b // 8) * 8)     # sublane rule when tiling batch
    if block_v != V:
        block_v = max(128, (block_v // 128) * 128)   # lane rule when tiling vocab
    num_b = pl.cdiv(B, block_b)
    num_v = pl.cdiv(V, block_v)
    mask_v = (block_v != V) and (V % block_v != 0)

    kernel = functools.partial(
        _label_smoothing_kernel,
        confidence=float(confidence),
        smoothing_value=float(smoothing_value),
        log_conf=float(math.log(confidence)) if confidence > 0.0 else 0.0,
        log_smooth=float(math.log(smoothing_value)),
        ignore_index=int(ignore_index),
        ign_chunk=int(ign_col // block_v),
        ign_off=int(ign_col % block_v),
        vocab=int(V),
        block_v=int(block_v),
        mask_v=bool(mask_v),
    )

    per_row = pl.pallas_call(
        kernel,
        out_shape=jax.ShapeDtypeStruct((B, 1), jnp.float32),
        grid=(num_b, num_v),
        in_specs=[
            pl.BlockSpec((block_b, block_v), lambda i, j: (i, j)),   # logits tile
            pl.BlockSpec((block_b, 1), lambda i, j: (i, 0)),         # targets tile
        ],
        out_specs=pl.BlockSpec((block_b, 1), lambda i, j: (i, 0)),   # per-row loss
        scratch_shapes=[pltpu.VMEM((block_b, 1), jnp.float32)] * 5,  # m, s, sx, xt, xi
        compiler_params=pltpu.CompilerParams(
            # batch axis "parallel" -> megacore sharding on v7x; vocab axis is
            # the online-logsumexp reduction -> "arbitrary" (and last).
            dimension_semantics=("parallel", "arbitrary"),
            vmem_limit_bytes=vmem_limit_bytes,
        ),
    )(output, target.astype(jnp.int32).reshape(B, 1))

    # 'batchmean' divides by B including ignored rows (matches PyTorch).
    return jnp.sum(per_row) / jnp.float32(B)


def _reference(output, target, *, label_smoothing, tgt_vocab_size, ignore_index):
    """Pure-JAX reference mirroring the PyTorch semantics (materialized form)."""
    B, V = output.shape
    smoothing_value = label_smoothing / (tgt_vocab_size - 2)
    confidence = 1.0 - label_smoothing
    ign_col = ignore_index if ignore_index >= 0 else ignore_index + V
    log_probs = jax.nn.log_softmax(output.astype(jnp.float32), axis=-1)
    col = jnp.arange(V)[None, :]
    tgt = target[:, None]
    p = jnp.full((B, V), smoothing_value, dtype=jnp.float32)
    p = jnp.where(col == ign_col, 0.0, p)
    p = jnp.where(col == tgt, confidence, p)
    p = jnp.where(tgt == ignore_index, 0.0, p)
    kl = jnp.where(p > 0.0,
                   p * (jnp.log(jnp.where(p > 0.0, p, 1.0)) - log_probs), 0.0)
    return jnp.sum(kl) / B


if __name__ == "__main__":
    key = jax.random.PRNGKey(0)
    B = 24
    V = 320                      # tgt_vocab_size; NOT a multiple of 128 -> exercises
                                 # the masked tail vocab chunk
    LABEL_SMOOTHING = 0.1
    IGNORE_INDEX = 0             # padding token id

    k1, k2 = jax.random.split(key)
    # bf16 logits in HBM; the kernel casts in-flight to f32 inside the fused reductions.
    output = jax.random.normal(k1, (B, V), dtype=jnp.float32).astype(jnp.bfloat16)
    target = jax.random.randint(k2, (B,), 0, V, dtype=jnp.int32)
    target = target.at[3].set(IGNORE_INDEX)   # exercise the ignored-row path

    loss = label_smoothing_loss(
        output, target,
        label_smoothing=LABEL_SMOOTHING,
        tgt_vocab_size=V,
        ignore_index=IGNORE_INDEX,
        block_b=8,               # force a 3x3 grid at this toy size
        block_v=128,
    )
    loss = jax.block_until_ready(loss)

    ref = _reference(
        output, target,
        label_smoothing=LABEL_SMOOTHING,
        tgt_vocab_size=V,
        ignore_index=IGNORE_INDEX,
    )
    assert jnp.allclose(loss, ref, rtol=5e-4, atol=5e-4), (loss, ref)

    print("KERNEL_OK")
</pallas_src>

<mosaic_0001>
module attributes {stable_mosaic.version = 11 : i64} {
  func.func @_label_smoothing_kernel(%arg0: i32, %arg1: i32, %arg2: memref<8x128xbf16, #tpu.memory_space<vmem>>, %arg3: memref<8x1xi32, #tpu.memory_space<vmem>>, %arg4: memref<8x1xf32, #tpu.memory_space<vmem>>, %arg5: memref<8x1xf32, #tpu.memory_space<vmem>>, %arg6: memref<8x1xf32, #tpu.memory_space<vmem>>, %arg7: memref<8x1xf32, #tpu.memory_space<vmem>>, %arg8: memref<8x1xf32, #tpu.memory_space<vmem>>, %arg9: memref<8x1xf32, #tpu.memory_space<vmem>>) attributes {dimension_semantics = [#tpu.dimension_semantics<parallel>, #tpu.dimension_semantics<arbitrary>], iteration_bounds = array<i64: 3, 3>, scalar_prefetch = 0 : i64, scratch_operands = 5 : i64, tpu.core_type = #tpu.core_type<tc>, window_params = [{transform_indices = @transform_0, window_bounds = array<i64: 8, 128>}, {transform_indices = @transform_1, window_bounds = array<i64: 8, 1>}, {transform_indices = @transform_2, window_bounds = array<i64: 8, 1>}]} {
    %c0_i32 = arith.constant 0 : i32
    %0 = arith.cmpi eq, %arg1, %c0_i32 : i32
    %1 = arith.extui %0 : i1 to i32
    %c0_i32_0 = arith.constant 0 : i32
    %2 = arith.cmpi ne, %1, %c0_i32_0 : i32
    scf.if %2 {
      %cst_29 = arith.constant 0xFF800000 : f32
      %52 = vector.broadcast %cst_29 : f32 to vector<8x1xf32>
      %c0_30 = arith.constant 0 : index
      %c0_31 = arith.constant 0 : index
      %53 = vector.load %arg5[%c0_30, %c0_31] : memref<8x1xf32, #tpu.memory_space<vmem>>, vector<8x1xf32>
      tpu.vector_store %arg5[%c0_30, %c0_31], %52 {strides = array<i32>} : memref<8x1xf32, #tpu.memory_space<vmem>>, vector<8x1xf32>,
      %cst_32 = arith.constant 0.000000e+00 : f32
      %54 = vector.broadcast %cst_32 : f32 to vector<8x1xf32>
      %c0_33 = arith.constant 0 : index
      %c0_34 = arith.constant 0 : index
      %55 = vector.load %arg6[%c0_33, %c0_34] : memref<8x1xf32, #tpu.memory_space<vmem>>, vector<8x1xf32>
      tpu.vector_store %arg6[%c0_33, %c0_34], %54 {strides = array<i32>} : memref<8x1xf32, #tpu.memory_space<vmem>>, vector<8x1xf32>,
      %cst_35 = arith.constant 0.000000e+00 : f32
      %56 = vector.broadcast %cst_35 : f32 to vector<8x1xf32>
      %c0_36 = arith.constant 0 : index
      %c0_37 = arith.constant 0 : index
      %57 = vector.load %arg7[%c0_36, %c0_37] : memref<8x1xf32, #tpu.memory_space<vmem>>, vector<8x1xf32>
      tpu.vector_store %arg7[%c0_36, %c0_37], %56 {strides = array<i32>} : memref<8x1xf32, #tpu.memory_space<vmem>>, vector<8x1xf32>,
      %cst_38 = arith.constant 0.000000e+00 : f32
      %58 = vector.broadcast %cst_38 : f32 to vector<8x1xf32>
      %c0_39 = arith.constant 0 : index
      %c0_40 = arith.constant 0 : index
      %59 = vector.load %arg8[%c0_39, %c0_40] : memref<8x1xf32, #tpu.memory_space<vmem>>, vector<8x1xf32>
      tpu.vector_store %arg8[%c0_39, %c0_40], %58 {strides = array<i32>} : memref<8x1xf32, #tpu.memory_space<vmem>>, vector<8x1xf32>,
      %cst_41 = arith.constant 0.000000e+00 : f32
      %60 = vector.broadcast %cst_41 : f32 to vector<8x1xf32>
      %c0_42 = arith.constant 0 : index
      %c0_43 = arith.constant 0 : index
      %61 = vector.load %arg9[%c0_42, %c0_43] : memref<8x1xf32, #tpu.memory_space<vmem>>, vector<8x1xf32>
      tpu.vector_store %arg9[%c0_42, %c0_43], %60 {strides = array<i32>} : memref<8x1xf32, #tpu.memory_space<vmem>>, vector<8x1xf32>,
    } else {
    }
    %c0 = arith.constant 0 : index
    %c0_1 = arith.constant 0 : index
    %3 = vector.load %arg2[%c0, %c0_1] : memref<8x128xbf16, #tpu.memory_space<vmem>>, vector<8x128xbf16>
    %c0_2 = arith.constant 0 : index
    %c0_3 = arith.constant 0 : index
    %4 = vector.load %arg3[%c0_2, %c0_3] : memref<8x1xi32, #tpu.memory_space<vmem>>, vector<8x1xi32>
    %5 = tpu.iota {dimensions = array<i32: 1>} : vector<8x128xi32>
    %c128_i32 = arith.constant 128 : i32
    %6 = arith.muli %arg1, %c128_i32 : i32
    %7 = vector.broadcast %6 : i32 to vector<8x128xi32>
    %8 = arith.addi %7, %5 : vector<8x128xi32>
    %9 = arith.extf %3 : vector<8x128xbf16> to vector<8x128xf32>
    %c320_i32 = arith.constant 320 : i32
    %10 = vector.broadcast %c320_i32 : i32 to vector<8x128xi32>
    %11 = arith.cmpi slt, %8, %10 : vector<8x128xi32>
    %cst = arith.constant 0xFF800000 : f32
    %12 = vector.broadcast %cst : f32 to vector<8x128xf32>
    %13 = arith.select %11, %9, %12 : vector<8x128xi1>, vector<8x128xf32>
    %c0_4 = arith.constant 0 : index
    %c0_5 = arith.constant 0 : index
    %14 = vector.load %arg5[%c0_4, %c0_5] : memref<8x1xf32, #tpu.memory_space<vmem>>, vector<8x1xf32>
    %cst_6 = arith.constant dense<0xFF800000> : vector<8xf32>
    %15 = vector.multi_reduction <maximumf>, %13, %cst_6 [1] : vector<8x128xf32> to vector<8xf32>
    %16 = vector.shape_cast %15 : vector<8xf32> to vector<8x1xf32>
    %17 = arith.maximumf %14, %16 : vector<8x1xf32>
    %18 = vector.broadcast %17 : vector<8x1xf32> to vector<8x128xf32>
    %19 = arith.subf %13, %18 : vector<8x128xf32>
    %20 = math.exp %19 : vector<8x128xf32>
    %c0_7 = arith.constant 0 : index
    %c0_8 = arith.constant 0 : index
    %21 = vector.load %arg6[%c0_7, %c0_8] : memref<8x1xf32, #tpu.memory_space<vmem>>, vector<8x1xf32>
    %22 = arith.subf %14, %17 : vector<8x1xf32>
    %23 = math.exp %22 : vector<8x1xf32>
    %24 = arith.mulf %21, %23 : vector<8x1xf32>
    %cst_9 = arith.constant dense<0.000000e+00> : vector<8xf32>
    %25 = vector.multi_reduction <add>, %20, %cst_9 [1] : vector<8x128xf32> to vector<8xf32>
    %26 = vector.shape_cast %25 : vector<8xf32> to vector<8x1xf32>
    %27 = arith.addf %24, %26 : vector<8x1xf32>
    %c0_10 = arith.constant 0 : index
    %c0_11 = arith.constant 0 : index
    %28 = vector.load %arg6[%c0_10, %c0_11] : memref<8x1xf32, #tpu.memory_space<vmem>>, vector<8x1xf32>
    tpu.vector_store %arg6[%c0_10, %c0_11], %27 {strides = array<i32>} : memref<8x1xf32, #tpu.memory_space<vmem>>, vector<8x1xf32>,
    %c0_12 = arith.constant 0 : index
    %c0_13 = arith.constant 0 : index
    %29 = vector.load %arg5[%c0_12, %c0_13] : memref<8x1xf32, #tpu.memory_space<vmem>>, vector<8x1xf32>
    tpu.vector_store %arg5[%c0_12, %c0_13], %17 {strides = array<i32>} : memref<8x1xf32, #tpu.memory_space<vmem>>, vector<8x1xf32>,
    %c0_14 = arith.constant 0 : index
    %c0_15 = arith.constant 0 : index
    %30 = vector.load %arg7[%c0_14, %c0_15] : memref<8x1xf32, #tpu.memory_space<vmem>>, vector<8x1xf32>
    %cst_16 = arith.constant 0.000000e+00 : f32
    %31 = vector.broadcast %cst_16 : f32 to vector<8x128xf32>
    %32 = arith.select %11, %13, %31 : vector<8x128xi1>, vector<8x128xf32>
    %cst_17 = arith.constant dense<0.000000e+00> : vector<8xf32>
    %33 = vector.multi_reduction <add>, %32, %cst_17 [1] : vector<8x128xf32> to vector<8xf32>
    %34 = vector.shape_cast %33 : vector<8xf32> to vector<8x1xf32>
    %35 = arith.addf %30, %34 : vector<8x1xf32>
    %c0_18 = arith.constant 0 : index
    %c0_19 = arith.constant 0 : index
    %36 = vector.load %arg7[%c0_18, %c0_19] : memref<8x1xf32, #tpu.memory_space<vmem>>, vector<8x1xf32>
    tpu.vector_store %arg7[%c0_18, %c0_19], %35 {strides = array<i32>} : memref<8x1xf32, #tpu.memory_space<vmem>>, vector<8x1xf32>,
    %c0_20 = arith.constant 0 : index
    %c0_21 = arith.constant 0 : index
    %37 = vector.load %arg8[%c0_20, %c0_21] : memref<8x1xf32, #tpu.memory_space<vmem>>, vector<8x1xf32>
    %38 = vector.broadcast %4 : vector<8x1xi32> to vector<8x128xi32>
    %39 = arith.cmpi eq, %8, %38 : vector<8x128xi32>
    %cst_22 = arith.constant 0.000000e+00 : f32
    %40 = vector.broadcast %cst_22 : f32 to vector<8x128xf32>
    %41 = arith.select %39, %13, %40 : vector<8x128xi1>, vector<8x128xf32>
    %cst_23 = arith.constant dense<0.000000e+00> : vector<8xf32>
    %42 = vector.multi_reduction <add>, %41, %cst_23 [1] : vector<8x128xf32> to vector<8xf32>
    %43 = vector.shape_cast %42 : vector<8xf32> to vector<8x1xf32>
    %44 = arith.addf %37, %43 : vector<8x1xf32>
    %c0_24 = arith.constant 0 : index
    %c0_25 = arith.constant 0 : index
    %45 = vector.load %arg8[%c0_24, %c0_25] : memref<8x1xf32, #tpu.memory_space<vmem>>, vector<8x1xf32>
    tpu.vector_store %arg8[%c0_24, %c0_25], %44 {strides = array<i32>} : memref<8x1xf32, #tpu.memory_space<vmem>>, vector<8x1xf32>,
    %c0_i32_26 = arith.constant 0 : i32
    %46 = arith.cmpi eq, %arg1, %c0_i32_26 : i32
    %47 = arith.extui %46 : i1 to i32
    %c0_i32_27 = arith.constant 0 : i32
    %48 = arith.cmpi ne, %47, %c0_i32_27 : i32
    scf.if %48 {
      %52 = vector.extract_strided_slice %3 {offsets = [0, 0], sizes = [8, 1], strides = [1, 1]} : vector<8x128xbf16> to vector<8x1xbf16>
      %53 = arith.extf %52 : vector<8x1xbf16> to vector<8x1xf32>
      %c0_29 = arith.constant 0 : index
      %c0_30 = arith.constant 0 : index
      %54 = vector.load %arg9[%c0_29, %c0_30] : memref<8x1xf32, #tpu.memory_space<vmem>>, vector<8x1xf32>
      tpu.vector_store %arg9[%c0_29, %c0_30], %53 {strides = array<i32>} : memref<8x1xf32, #tpu.memory_space<vmem>>, vector<8x1xf32>,
    } else {
    }
    %c2_i32 = arith.constant 2 : i32
    %49 = arith.cmpi eq, %arg1, %c2_i32 : i32
    %50 = arith.extui %49 : i1 to i32
    %c0_i32_28 = arith.constant 0 : i32
    %51 = arith.cmpi ne, %50, %c0_i32_28 : i32
    scf.if %51 {
      %c0_29 = arith.constant 0 : index
      %c0_30 = arith.constant 0 : index
      %52 = vector.load %arg5[%c0_29, %c0_30] : memref<8x1xf32, #tpu.memory_space<vmem>>, vector<8x1xf32>
      %c0_31 = arith.constant 0 : index
      %c0_32 = arith.constant 0 : index
      %53 = vector.load %arg6[%c0_31, %c0_32] : memref<8x1xf32, #tpu.memory_space<vmem>>, vector<8x1xf32>
      %54 = math.log %53 : vector<8x1xf32>
      %55 = arith.addf %52, %54 : vector<8x1xf32>
      %c0_33 = arith.constant 0 : index
      %c0_34 = arith.constant 0 : index
      %56 = vector.load %arg8[%c0_33, %c0_34] : memref<8x1xf32, #tpu.memory_space<vmem>>, vector<8x1xf32>
      %57 = arith.subf %56, %55 : vector<8x1xf32>
      %c0_35 = arith.constant 0 : index
      %c0_36 = arith.constant 0 : index
      %58 = vector.load %arg9[%c0_35, %c0_36] : memref<8x1xf32, #tpu.memory_space<vmem>>, vector<8x1xf32>
      %59 = arith.subf %58, %55 : vector<8x1xf32>
      %c0_37 = arith.constant 0 : index
      %c0_38 = arith.constant 0 : index
      %60 = vector.load %arg7[%c0_37, %c0_38] : memref<8x1xf32, #tpu.memory_space<vmem>>, vector<8x1xf32>
      %cst_39 = arith.constant 3.200000e+02 : f32
      %61 = vector.broadcast %cst_39 : f32 to vector<8x1xf32>
      %62 = arith.mulf %61, %55 : vector<8x1xf32>
      %63 = arith.subf %60, %62 : vector<8x1xf32>
      %64 = arith.subf %63, %57 : vector<8x1xf32>
      %65 = arith.subf %64, %59 : vector<8x1xf32>
      %cst_40 = arith.constant -2564.55444 : f32
      %66 = vector.broadcast %cst_40 : f32 to vector<8x1xf32>
      %67 = arith.subf %66, %65 : vector<8x1xf32>
      %cst_41 = arith.constant 3.14465404E-4 : f32
      %68 = vector.broadcast %cst_41 : f32 to vector<8x1xf32>
      %69 = arith.mulf %68, %67 : vector<8x1xf32>
      %cst_42 = arith.constant -0.105360515 : f32
      %70 = vector.broadcast %cst_42 : f32 to vector<8x1xf32>
      %71 = arith.subf %70, %57 : vector<8x1xf32>
      %cst_43 = arith.constant 0.899999976 : f32
      %72 = vector.broadcast %cst_43 : f32 to vector<8x1xf32>
      %73 = arith.mulf %72, %71 : vector<8x1xf32>
      %74 = arith.addf %69, %73 : vector<8x1xf32>
      %c0_i32_44 = arith.constant 0 : i32
      %75 = vector.broadcast %c0_i32_44 : i32 to vector<8x1xi32>
      %76 = arith.cmpi ne, %4, %75 : vector<8x1xi32>
      %cst_45 = arith.constant 0.000000e+00 : f32
      %77 = vector.broadcast %cst_45 : f32 to vector<8x1xf32>
      %78 = arith.select %76, %74, %77 : vector<8x1xi1>, vector<8x1xf32>
      %c0_46 = arith.constant 0 : index
      %c0_47 = arith.constant 0 : index
      %79 = vector.load %arg4[%c0_46, %c0_47] : memref<8x1xf32, #tpu.memory_space<vmem>>, vector<8x1xf32>
      tpu.vector_store %arg4[%c0_46, %c0_47], %78 {strides = array<i32>} : memref<8x1xf32, #tpu.memory_space<vmem>>, vector<8x1xf32>,
    } else {
    }
    return
  }
  func.func @transform_0(%arg0: i32, %arg1: i32) -> (i32, i32) {
    %c0_i32 = arith.constant 0 : i32
    return %arg0, %arg1 : i32, i32
  }
  func.func @transform_1(%arg0: i32, %arg1: i32) -> (i32, i32) {
    %c0_i32 = arith.constant 0 : i32
    %c0_i32_0 = arith.constant 0 : i32
    return %arg0, %c0_i32 : i32, i32
  }
  func.func @transform_2(%arg0: i32, %arg1: i32) -> (i32, i32) {
    %c0_i32 = arith.constant 0 : i32
    %c0_i32_0 = arith.constant 0 : i32
    return %arg0, %c0_i32 : i32, i32
  }
}

</mosaic_0001>

<llo_original>
// kernel: tpu_custom_call.1
$region0: #{tpu_custom_call.1}
  #allocation0 [shape = 'u32[]', space=smem, size = 0x4, offset = 0x4, fixed_abs, tag = 'smem constant byte address 0x4 - core index']
  #allocation1 [shape = 'u32[144,128]{1,0:T(1,128)}', space=vmem, size = 0x12000, scoped, tag = 'internal scratch']
  #allocation2 [shape = 'f32[8,1]{1,0:T(8,128)}', space=vmem, size = 0x1000, scoped, tag = 'scratch operand']
  #allocation3 [shape = 'f32[8,1]{1,0:T(8,128)}', space=vmem, size = 0x1000, scoped, tag = 'scratch operand']
  #allocation4 [shape = 'f32[8,1]{1,0:T(8,128)}', space=vmem, size = 0x1000, scoped, tag = 'scratch operand']
  #allocation5 [shape = 'f32[8,1]{1,0:T(8,128)}', space=vmem, size = 0x1000, scoped, tag = 'scratch operand']
  #allocation6 [shape = 'f32[8,1]{1,0:T(8,128)}', space=vmem, size = 0x1000, scoped, tag = 'scratch operand']
  %s0 = inlined_call_operand.hbm [shape: bf16[24,320], index: 0, kind: input, shape index: {}]
  %s1 = inlined_call_operand.vmem [shape: s32[24,1], index: 1, kind: input, shape index: {}]
  %s2 = inlined_call_operand.vmem [shape: f32[24,1], index: 2, kind: output, shape index: {}]
  %s3 = sld [smem:[#allocation0]]
  $region57: #{tpu_custom_call.1} parent=0
    _
  %s5 = ssub.s32 1, %s3
  %s6 = scalar_select 0, %s5, %s3
  $region1: #{tpu_custom_call.1} parent=0
    #allocation7 [shape = 'u8[4096]{0}', space=vmem, size = 0x1000, scoped, tag = 'input window, operand 0']
    #allocation8 [shape = 's32[2]{0}', space=sflag, size = 0x8, scoped, tag = 'scoped memory for tpu_custom_call.1']
    %7 = vsyncpa [#allocation8], 0
    %s8 = scalar_lea.sflag [#allocation8], 1
    %9 = vsyncpa %s8, 0
    loop: start=0, step=1, limit=11
    $region2: #{tpu_custom_call.1} parent=1 // loop_pre_header
      _
    $region3: #{tpu_custom_call.1} parent=1 // loop_header
      %s11 = sphi 0, %s15
      %p12 = scmp.ge.s32.totalorder %s11, 11
      %s18 = sphi 0, %s30
      %s19 = sphi 0, %s26
      %s20 = sphi 0, %s18
      %s21 = sphi 0, %s19
      %s22 = sphi 0, %s20
      %s23 = sphi 0, %s21
      %s35 = sphi 0, %s37
      %s38 = sphi 0, %s35
      %s39 = sphi 0, %s38
      %s55 = sphi 0, %s39
      %s61 = sphi 0, %s63
      %s64 = sphi 0, %s61
      %s65 = sphi 0, %s64
      %s81 = sphi 0, %s65
      %s87 = sphi 0, %s89
      %s90 = sphi 0, %s87
      %s91 = sphi 0, %s90
      %s107 = sphi 0, %s91
    $region4: #{tpu_custom_call.1} parent=1 // loop_header_branch
      %14 = sbr.rel (%p12) target = $region8
    $region5: #{tpu_custom_call.1} parent=1 // loop_body
      %s16 = ssub.s32 %s11, 1
      %s17 = ssub.s32 %s11, 2
      %s24 = sadd.s32 1, %s19
      %p25 = scmp.ge.s32.totalorder %s24, 3
      %s26 = scalar_select %p25, 0, %s24
      %s27 = sadd.s32 1, %s18
      %s28 = scalar_select %p25, %s27, %s18
      %p29 = scmp.ge.s32.totalorder %s28, 3
      %s30 = scalar_select %p29, 0, %s28
      %s31 = ssub.s32 %s18, %s30
      %s32 = ssub.s32 %s19, %s26
      %s33 = sor.u32 %s31, %s32
      %p34 = scmp.eq.s32.totalorder %s33, 0
      %s36 = sadd.s32 %s35, 1
      %s37 = scalar_select %p34, %s35, %s36
      %p40 = pneg %p34
      %p41 = scmp.eq.s32.totalorder %s11, 8
      %p42 = por %p40, %p41
      %p43 = scmp.ne.s32.totalorder %s35, %s38
      %p44 = scmp.eq.s32.totalorder %s11, 0
      %p45 = por %p43, %p44
      %p46 = scmp.ne.s32.totalorder %s35, %s38
      %p47 = scmp.eq.s32.totalorder %s16, 8
      %p48 = por %p46, %p47
      %p49 = scmp.ne.s32.totalorder %s38, %s39
      %p50 = scmp.eq.s32.totalorder %s16, 0
      %p51 = por %p49, %p50
      %p52 = scmp.ne.s32.totalorder %s38, %s39
      %p53 = scmp.eq.s32.totalorder %s17, 8
      %p54 = por %p52, %p53
      %p56 = scmp.ne.s32.totalorder %s39, %s55
      %p57 = scmp.eq.s32.totalorder %s17, 0
      %p58 = por %p56, %p57
      %s59 = ssub.s32 %s18, %s30
      %p60 = scmp.eq.s32.totalorder %s59, 0
      %s62 = sadd.s32 %s61, 1
      %s63 = scalar_select %p60, %s61, %s62
      %p66 = pneg %p60
      %p67 = scmp.eq.s32.totalorder %s11, 8
      %p68 = por %p66, %p67
      %p69 = scmp.ne.s32.totalorder %s61, %s64
      %p70 = scmp.eq.s32.totalorder %s11, 0
      %p71 = por %p69, %p70
      %p72 = scmp.ne.s32.totalorder %s61, %s64
      %p73 = scmp.eq.s32.totalorder %s16, 8
      %p74 = por %p72, %p73
      %p75 = scmp.ne.s32.totalorder %s64, %s65
      %p76 = scmp.eq.s32.totalorder %s16, 0
      %p77 = por %p75, %p76
      %p78 = scmp.ne.s32.totalorder %s64, %s65
      %p79 = scmp.eq.s32.totalorder %s17, 8
      %p80 = por %p78, %p79
      %p82 = scmp.ne.s32.totalorder %s65, %s81
      %p83 = scmp.eq.s32.totalorder %s17, 0
      %p84 = por %p82, %p83
      %s85 = ssub.s32 %s18, %s30
      %p86 = scmp.eq.s32.totalorder %s85, 0
      %s88 = sadd.s32 %s87, 1
      %s89 = scalar_select %p86, %s87, %s88
      %p92 = pneg %p86
      %p93 = scmp.eq.s32.totalorder %s11, 8
      %p94 = por %p92, %p93
      %p95 = scmp.ne.s32.totalorder %s87, %s90
      %p96 = scmp.eq.s32.totalorder %s11, 0
      %p97 = por %p95, %p96
      %p98 = scmp.ne.s32.totalorder %s87, %s90
      %p99 = scmp.eq.s32.totalorder %s16, 8
      %p100 = por %p98, %p99
      %p101 = scmp.ne.s32.totalorder %s90, %s91
      %p102 = scmp.eq.s32.totalorder %s16, 0
      %p103 = por %p101, %p102
      %p104 = scmp.ne.s32.totalorder %s90, %s91
      %p105 = scmp.eq.s32.totalorder %s17, 8
      %p106 = por %p104, %p105
      %p108 = scmp.ne.s32.totalorder %s91, %s107
      %p109 = scmp.eq.s32.totalorder %s17, 0
      %p110 = por %p108, %p109
      %p111 = scmp.le.s32.totalorder 1, %s11
      %p112 = scmp.lt.s32.totalorder %s11, 10
      %p113 = pnand %p111, %p112
      %p114 = pneg %p113
      // Predicated region
      $region9: #{tpu_custom_call.1} parent=5 // pred_check
        _
      $region10: #{tpu_custom_call.1} parent=5 // pred_check_branch
        %116 = sbr.rel (%p113) target = $region12
      $region11: #{tpu_custom_call.1} parent=5 // pred_region
        %s117 = ssub.s32 %s11, 1
      $region12: #{tpu_custom_call.1} parent=5 // pred_fallthru
        _
      %p118 = scmp.lt.s32.totalorder %s11, 9
      // Predicated region
      $region13: #{tpu_custom_call.1} parent=5 // pred_check
        %p119 = pneg %p118
      $region14: #{tpu_custom_call.1} parent=5 // pred_check_branch
        %121 = sbr.rel (%p119) target = $region16
      $region15: #{tpu_custom_call.1} parent=5 // pred_region
        // Predicated region
        $region17: #{tpu_custom_call.1} parent=15 // pred_check
          %p122 = pneg %p45
        $region18: #{tpu_custom_call.1} parent=15 // pred_check_branch
          %124 = sbr.rel (%p122) target = $region20
        $region19: #{tpu_custom_call.1} parent=15 // pred_region
          %s125 = sand.u32 %s35, 1
          %s126 = scalar_lea.sflag [#allocation8], %s125
          %s127 = sand.u32 %s35, 1
          %s128 = smul.addr %s127, 4
          %s129 = scalar_lea.vmem [#allocation7], %s128
          %s131 = ssub.s32 64, 64
          %132 = vsyncadd %s126, %s131
          %s133 = smul.addr %s18, 3
          %s134 = sadd.s32 %s19, %s133
          %s135 = smul.addr %s134, 64
          %s136 = scalar_lea.hbm %s0, %s135
          %s138 = sshll.u32 %s129, 4
          %s139 = int_to_ptr.vmem [resolvable:$true] %s138
          %141 = dma.hbm_to_vmem [thread:$0]  %s136, 64, %s139, %s126
        $region20: #{tpu_custom_call.1} parent=15 // pred_fallthru
          _
        // Predicated region
        $region21: #{tpu_custom_call.1} parent=15 // pred_check
          %p142 = pneg %p71
        $region22: #{tpu_custom_call.1} parent=15 // pred_check_branch
          %144 = sbr.rel (%p142) target = $region24
        $region23: #{tpu_custom_call.1} parent=15 // pred_region
          %p145 = scmp.lt.s32.totalorder %s18, 2
          %s146 = scalar_select %p145, %s18, 2
          %s147 = smul.addr %s146, 8
          %s148 = scalar_lea.vmem %s1, %s147
        $region24: #{tpu_custom_call.1} parent=15 // pred_fallthru
          _
      $region16: #{tpu_custom_call.1} parent=5 // pred_fallthru
        _
      %p149 = scmp.le.s32.totalorder 1, %s11
      %p150 = scmp.lt.s32.totalorder %s11, 10
      %p151 = pnand %p149, %p150
      %p152 = pneg %p151
      // Predicated region
      $region25: #{tpu_custom_call.1} parent=5 // pred_check
        _
      $region26: #{tpu_custom_call.1} parent=5 // pred_check_branch
        %154 = sbr.rel (%p151) target = $region28
      $region27: #{tpu_custom_call.1} parent=5 // pred_region
        %s155 = ssub.s32 %s11, 1
        %s156 = sand.u32 %s38, 1
        %s157 = scalar_lea.sflag [#allocation8], %s156
        %s158 = sand.u32 %s38, 1
        %s159 = smul.addr %s158, 4
        %s160 = scalar_lea.vmem [#allocation7], %s159
        // Predicated region
        $region29: #{tpu_custom_call.1} parent=27 // pred_check
          %p161 = pneg %p51
        $region30: #{tpu_custom_call.1} parent=27 // pred_check_branch
          %163 = sbr.rel (%p161) target = $region32
        $region31: #{tpu_custom_call.1} parent=27 // pred_region
          %164 = dma.done %s157, 64
        $region32: #{tpu_custom_call.1} parent=27 // pred_fallthru
          _
        %s165 = sand.u32 %s38, 1
        %s166 = scalar_lea.sflag [#allocation8], %s165
        %s167 = sand.u32 %s38, 1
        %s168 = smul.addr %s167, 4
        %s169 = scalar_lea.vmem [#allocation7], %s168
        %p170 = pneg %p51
        %p171 = pneg %p48
        %p172 = scmp.lt.s32.totalorder %s20, 2
        %s173 = scalar_select %p172, %s20, 2
        %s174 = smul.addr %s173, 8
        %s175 = scalar_lea.vmem %s1, %s174
        %p176 = pneg %p77
        %p177 = pneg %p74
        %p178 = pneg %p103
        %p179 = pneg %p100
        %p180 = scmp.lt.s32.totalorder %s20, 2
        %s181 = scalar_select %p180, %s20, 2
        %s182 = smul.addr %s181, 8
        %s183 = scalar_lea.vmem %s2, %s182
        %p184 = scmp.lt.s32.totalorder %s20, 2
        %s185 = scalar_select %p184, %s20, 2
        %s186 = smul.addr %s185, 8
        %s187 = scalar_lea.vmem %s1, %s186
        %p188 = scmp.lt.s32.totalorder %s20, 2
        %s189 = scalar_select %p188, %s20, 2
        %s190 = smul.addr %s189, 8
        %s191 = scalar_lea.vmem %s2, %s190
        %p192 = scmp.eq.s32.totalorder %s21, 0
        // Predicated region
        $region33: #{tpu_custom_call.1} parent=27 // pred_check
          %p193 = pneg %p192
        $region34: #{tpu_custom_call.1} parent=27 // pred_check_branch
          %195 = sbr.rel (%p193) target = $region36
        $region35: #{tpu_custom_call.1} parent=27 // pred_region
          %vm196 = vcmask 7168
          %197 = vst.msk [vmem:[#allocation2] sm:$0xff] %vm196, -inf
          %198 = vst.msk [vmem:[#allocation3] sm:$0xff] %vm196, 0.0
          %199 = vst.msk [vmem:[#allocation4] sm:$0xff] %vm196, 0.0
          %200 = vst.msk [vmem:[#allocation5] sm:$0xff] %vm196, 0.0
          %201 = vst.msk [vmem:[#allocation6] sm:$0xff] %vm196, 0.0
        $region36: #{tpu_custom_call.1} parent=27 // pred_fallthru
          _
        %v202 = vld [vmem:[%s160] sm:$0xf]
        %v203 = vld [vmem:[%s187] sm:$0xff]
        %v204 = vlaneseq
        %v205 = vand.u32 %v204, 127
        %s206 = smul.u32 %s21, 128
        %v207 = vstv %s206
        %v208 = vadd.s32 %v207, %v205
        %v209 = vunpack.c.l.bf16 %v202
        %vm210 = vcmp.lt.s32.totalorder %v208, 320
        %v211 = vsel %vm210, %v209, -inf
        %v212 = vld [vmem:[#allocation2] sm:$0xff]
        %213 = vmax.xlane.f32.xlu0 %v211
        %v214 = vpop.xlane.xlu0 %213
        %v215 = vmax.f32 %v212, %v214
        %217 = vset.pattern.permute.xlu0 0
        %218 = vperm.xlu0 %217, %v215
        %v219 = vpop.permute.xlu0 %218
        %v221 = vsub.f32 %v211, %v219
        %v222 = vmul.f32 %v221, 1.442695
        %v223 = vpow.pop %v222
        %v224 = vld [vmem:[#allocation3] sm:$0xff]
        %v225 = vsub.f32 %v212, %v215
        %v226 = vmul.f32 %v225, 1.442695
        %v227 = vpow.pop %v226
        %v228 = vmul.f32 %v224, %v227
        %229 = vadd.xlane.f32.xlu0 %v223
        %v230 = vpop.xlane.xlu0 %229
        %v231 = vadd.f32 %v228, %v230
        %vm232 = vcmask 7168
        %233 = vst.msk [vmem:[#allocation3] sm:$0xff] %vm232, %v231
        %234 = vst.msk [vmem:[#allocation2] sm:$0xff] %vm232, %v215
        %v235 = vld [vmem:[#allocation4] sm:$0xff]
        %v236 = vsel %vm210, %v209, 0.0
        %237 = vadd.xlane.f32.xlu0 %v236
        %v238 = vpop.xlane.xlu0 %237
        %v239 = vadd.f32 %v235, %v238
        %240 = vst.msk [vmem:[#allocation4] sm:$0xff] %vm232, %v239
        %v241 = vld [vmem:[#allocation5] sm:$0xff]
        %242 = vset.pattern.permute.xlu0 0
        %243 = vperm.xlu0 %242, %v203
        %v244 = vpop.permute.xlu0 %243
        %vm245 = vcmp.eq.s32.totalorder %v208, %v244
        %v246 = vsel %vm245, %v211, 0.0
        %247 = vadd.xlane.f32.xlu0 %v246
        %v248 = vpop.xlane.xlu0 %247
        %v249 = vadd.f32 %v241, %v248
        %250 = vst.msk [vmem:[#allocation5] sm:$0xff] %vm232, %v249
        // Predicated region
        $region37: #{tpu_custom_call.1} parent=27 // pred_check
          %p251 = pneg %p192
        $region38: #{tpu_custom_call.1} parent=27 // pred_check_branch
          %253 = sbr.rel (%p251) target = $region40
        $region39: #{tpu_custom_call.1} parent=27 // pred_region
          %254 = vst.msk [vmem:[#allocation6] sm:$0xff] %vm232, %v209
        $region40: #{tpu_custom_call.1} parent=27 // pred_fallthru
          _
        %p255 = scmp.eq.s32.totalorder %s21, 2
        // Predicated region
        $region41: #{tpu_custom_call.1} parent=27 // pred_check
          %p256 = pneg %p255
        $region42: #{tpu_custom_call.1} parent=27 // pred_check_branch
          %258 = sbr.rel (%p256) target = $region44
        $region43: #{tpu_custom_call.1} parent=27 // pred_region
          %v259 = vld [vmem:[#allocation2] sm:$0xff]
          %v260 = vld [vmem:[#allocation3] sm:$0xff]
          %v261 = vlog2.pop %v260
          %v262 = vmul.f32 %v261, 0.6931472
          %v263 = vadd.f32 %v259, %v262
          %v264 = vld [vmem:[#allocation5] sm:$0xff]
          %v265 = vsub.f32 %v264, %v263
          %v266 = vld [vmem:[#allocation6] sm:$0xff]
          %v267 = vsub.f32 %v266, %v263
          %v268 = vld [vmem:[#allocation4] sm:$0xff]
          %v269 = vmul.f32 %v263, 320.0
          %v270 = vsub.f32 %v268, %v269
          %v271 = vsub.f32 %v270, %v265
          %v272 = vsub.f32 %v271, %v267
          %v273 = vsub.f32 -2564.5544, %v272
          %v274 = vmul.f32 %v273, 0.0003144654
          %v275 = vsub.f32 -0.105360515, %v265
          %v276 = vmul.f32 %v275, 0.9
          %v277 = vadd.f32 %v274, %v276
          %vm278 = vcmp.ne.s32.totalorder %v203, 0
          %v279 = vsel %vm278, %v277, 0.0
          %280 = vst.msk [vmem:[%s191] sm:$0xff] %vm232, %v279
        $region44: #{tpu_custom_call.1} parent=27 // pred_fallthru
          _
        %p281 = scmp.lt.s32.totalorder %s20, 2
        %s282 = scalar_select %p281, %s20, 2
        %s283 = smul.addr %s282, 8
        %s284 = scalar_lea.vmem %s2, %s283
        // Predicated region
        $region45: #{tpu_custom_call.1} parent=27 // pred_check
          %p285 = pneg %p100
        $region46: #{tpu_custom_call.1} parent=27 // pred_check_branch
          %287 = sbr.rel (%p285) target = $region48
        $region47: #{tpu_custom_call.1} parent=27 // pred_region
          _
        $region48: #{tpu_custom_call.1} parent=27 // pred_fallthru
          _
      $region28: #{tpu_custom_call.1} parent=5 // pred_fallthru
        _
      %p288 = scmp.le.s32.totalorder 2, %s11
      // Predicated region
      $region49: #{tpu_custom_call.1} parent=5 // pred_check
        %p289 = pneg %p288
      $region50: #{tpu_custom_call.1} parent=5 // pred_check_branch
        %291 = sbr.rel (%p289) target = $region52
      $region51: #{tpu_custom_call.1} parent=5 // pred_region
        %s292 = ssub.s32 %s11, 2
        // Predicated region
        $region53: #{tpu_custom_call.1} parent=51 // pred_check
          %p293 = pneg %p106
        $region54: #{tpu_custom_call.1} parent=51 // pred_check_branch
          %295 = sbr.rel (%p293) target = $region56
        $region55: #{tpu_custom_call.1} parent=51 // pred_region
          %p296 = scmp.lt.s32.totalorder %s22, 2
          %s297 = scalar_select %p296, %s22, 2
          %s298 = smul.addr %s297, 8
          %s299 = scalar_lea.vmem %s2, %s298
        $region56: #{tpu_custom_call.1} parent=51 // pred_fallthru
          _
      $region52: #{tpu_custom_call.1} parent=5 // pred_fallthru
        _
    $region6: #{tpu_custom_call.1} parent=1 // loop_footer
      %s15 = sadd.s32 1, %s11
    $region7: #{tpu_custom_call.1} parent=1 // loop_footer_branch
      %10 = sbr.rel target = $region3
    $region8: #{tpu_custom_call.1} parent=1 // loop_exit
      _
    %300 = vsyncpa [#allocation8], 1
    %s301 = scalar_lea.sflag [#allocation8], 1
    %302 = vsyncpa %s301, 1

</llo_original>
